<compile_context>
chip_gen: v7x
topology: tpu7x:2x2x1
jax: 0.10.0
libtpu: 0.0.40
codegen_flags: <defaults>
</compile_context>

<pallas_src>
import functools

import jax
import jax.numpy as jnp
import numpy as np
from jax.experimental import pallas as pl
from jax.experimental.pallas import tpu as pltpu

LAYERS = [2, 20, 20, 20, 20, 2]
F_PAD = 24          # hidden feature width padded onto sublanes (20 -> 24, 8-granule)
F_OUT_PAD = 8       # final-layer weight rows padded to 8 (psi, p live in rows 0, 1)
N_OUT = 2           # rows actually written to HBM
TB_DEFAULT = 8192   # batch tile (lanes); multiple of 128, safe for all VMEM budgets


def _round_up(n, m):
    return (n + m - 1) // m * m


def _mlp_kernel(n_layers, norm_ref, xy_ref, *rest):
    """One batch tile of the PINN MLP.

    Layout: features on sublanes (padded to F_PAD), batch on lanes (TB).
      norm_ref : (2,)            f32 SMEM -> [lb, ub]
      xy_ref   : (2, TB)         f32      -> raw [x; y] rows for this tile
      w_i      : (F_PAD, F_PAD)  f32      -> torch weight, zero-padded
                 (last layer: (F_OUT_PAD, F_PAD))
      b_i      : (F_PAD, 1) / (F_OUT_PAD, 1) f32
      out_ref  : (N_OUT, TB)     f32      -> rows 0,1 = psi, p
    """
    out_ref = rest[-1]
    wb = rest[:-1]

    lb = norm_ref[0]
    ub = norm_ref[1]

    # Input normalization: one scalar reciprocal + vector multiply
    # (numerically within 1 ulp of torch's (x - lb) / (ub - lb)).
    inv = 1.0 / (ub - lb)
    xy = (xy_ref[...] - lb) * inv                  # (2, TB)
    x_row = xy[0:1, :]                             # (1, TB)
    y_row = xy[1:2, :]                             # (1, TB)

    # First layer (real fan_in == 2): two broadcast mul-adds on the VPU
    # instead of a K=2 matmul.
    w0 = wb[0]
    b0 = wb[1]
    z = w0[:, 0:1] * x_row + w0[:, 1:2] * y_row + b0[...]   # (F_PAD, TB)
    a = jnp.tanh(z)

    # Hidden layers on the MXU: z = W @ a + b; final layer has 8 padded rows.
    for i in range(1, n_layers):
        w = wb[2 * i][...]                         # (F_PAD|F_OUT_PAD, F_PAD)
        b = wb[2 * i + 1][...]                     # (F_PAD|F_OUT_PAD, 1)
        z = jnp.dot(w, a, preferred_element_type=jnp.float32) + b
        a = jnp.tanh(z) if i < n_layers - 1 else z

    # a is (F_OUT_PAD, TB); rows 0,1 hold [psi, p].  Write only the real rows
    # (lane dim TB is a 128-multiple -> unmasked full-lane stores).
    out_ref[...] = a[:N_OUT, :]


def init_params(key, layers=LAYERS):
    """Xavier-normal weights (gain=1.0), zero biases — matches the PyTorch init."""
    params = []
    for i in range(len(layers) - 1):
        fan_in, fan_out = layers[i], layers[i + 1]
        key, sub = jax.random.split(key)
        std = float(np.sqrt(2.0 / (fan_in + fan_out)))
        w = jax.random.normal(sub, (fan_out, fan_in), dtype=jnp.float32) * std  # torch layout
        b = jnp.zeros((fan_out,), dtype=jnp.float32)
        params.append((w, b))
    return params


def pinn_forward(x, y, params, lb, ub, *, tb=TB_DEFAULT):
    """x, y: (N,) float32.  Returns (N, 2) float32 = [psi, p]."""
    n = x.shape[0]
    n_layers = len(params)
    n_out = params[-1][0].shape[0]

    # Grid-aware batch-tile clamp: multiple of 128 lanes, capped so that the
    # grid has >= 2 steps whenever there is enough work (v7x megacore gets both
    # TensorCores busy via the "parallel" batch axis) and the trailing tile is
    # not mostly padding.
    cap = _round_up(max((n + 1) // 2, 1), 128)
    tb = max(128, _round_up(min(int(tb), cap), 128))
    n_pad = _round_up(n, tb)
    grid = (n_pad // tb,)

    # Transposed (2, n_pad) input slab: batch on lanes, 8 B of HBM per point.
    xy = jnp.stack([x, y], axis=0).astype(jnp.float32)            # (2, N)
    xy_t = jnp.zeros((2, n_pad), jnp.float32).at[:, :n].set(xy)

    # Normalization bounds as runtime SMEM scalars (no recompile when they change).
    norm = jnp.asarray([lb, ub], dtype=jnp.float32)

    # Pad weights/biases onto (F_PAD, F_PAD) / (F_PAD, 1); the final layer is
    # padded only to F_OUT_PAD rows.  Padding is zero so results on the real
    # slice are exact (tanh(0) == 0 keeps padded sublanes zero throughout).
    wb_inputs = []
    wb_specs = []
    for idx, (w, b) in enumerate(params):
        fan_out, fan_in = w.shape
        rows = F_PAD if idx < n_layers - 1 else F_OUT_PAD
        w_p = jnp.zeros((rows, F_PAD), jnp.float32).at[:fan_out, :fan_in].set(w)
        b_p = jnp.zeros((rows, 1), jnp.float32).at[:fan_out, 0].set(b)
        wb_inputs += [w_p, b_p]
        wb_specs += [
            pl.BlockSpec((rows, F_PAD), lambda i: (0, 0)),   # VMEM-resident
            pl.BlockSpec((rows, 1), lambda i: (0, 0)),
        ]

    kernel = functools.partial(_mlp_kernel, n_layers)

    out_pad = pl.pallas_call(
        kernel,
        out_shape=jax.ShapeDtypeStruct((N_OUT, n_pad), jnp.float32),
        grid=grid,
        in_specs=[pl.BlockSpec(memory_space=pltpu.MemorySpace.SMEM),   # [lb, ub]
                  pl.BlockSpec((2, tb), lambda i: (0, i))] + wb_specs,
        out_specs=pl.BlockSpec((N_OUT, tb), lambda i: (0, i)),
        compiler_params=pltpu.CompilerParams(
            dimension_semantics=("parallel",)),
    )(norm, xy_t, *wb_inputs)

    return out_pad[:n_out, :n].T


def pinn_forward_ref(x, y, params, lb, ub):
    """Pure-JAX reference for correctness checking."""
    a = jnp.stack([x, y], axis=1).astype(jnp.float32)
    a = (a - lb) / (ub - lb)
    for i, (w, b) in enumerate(params):
        z = a @ w.T + b
        a = jnp.tanh(z) if i < len(params) - 1 else z
    return a


if __name__ == "__main__":
    key = jax.random.PRNGKey(0)
    k_x, k_y, k_p = jax.random.split(key, 3)

    N = 400  # N_train collocation points in the original script
    x = jax.random.uniform(k_x, (N,), dtype=jnp.float32)
    y = jax.random.uniform(k_y, (N,), dtype=jnp.float32)

    # lb / ub are the scalar min / max of the training coordinates (as in the script)
    xy = jnp.stack([x, y], axis=1)
    lb = float(jnp.min(xy))
    ub = float(jnp.max(xy))

    params = init_params(k_p, LAYERS)

    # Default tb -> grid-aware clamp gives tb=256, n_pad=512, 2 grid steps:
    # exercises the batch pipeline, lane padding and the 2-TC-friendly grid.
    out = pinn_forward(x, y, params, lb, ub)
    out = jax.block_until_ready(out)

    ref = pinn_forward_ref(x, y, params, lb, ub)
    assert out.shape == (N, 2)
    np.testing.assert_allclose(np.asarray(out), np.asarray(ref), rtol=1e-5, atol=1e-5)

    print("KERNEL_OK")
</pallas_src>

<mosaic_0001>
module attributes {stable_mosaic.version = 11 : i64} {
  func.func @_mlp_kernel(%arg0: i32, %arg1: memref<2xf32, #tpu.memory_space<smem>>, %arg2: memref<2x256xf32, #tpu.memory_space<vmem>>, %arg3: memref<24x24xf32, #tpu.memory_space<vmem>>, %arg4: memref<24x1xf32, #tpu.memory_space<vmem>>, %arg5: memref<24x24xf32, #tpu.memory_space<vmem>>, %arg6: memref<24x1xf32, #tpu.memory_space<vmem>>, %arg7: memref<24x24xf32, #tpu.memory_space<vmem>>, %arg8: memref<24x1xf32, #tpu.memory_space<vmem>>, %arg9: memref<24x24xf32, #tpu.memory_space<vmem>>, %arg10: memref<24x1xf32, #tpu.memory_space<vmem>>, %arg11: memref<8x24xf32, #tpu.memory_space<vmem>>, %arg12: memref<8x1xf32, #tpu.memory_space<vmem>>, %arg13: memref<2x256xf32, #tpu.memory_space<vmem>>) attributes {dimension_semantics = [#tpu.dimension_semantics<parallel>], iteration_bounds = array<i64: 2>, scalar_prefetch = 0 : i64, scratch_operands = 0 : i64, tpu.core_type = #tpu.core_type<tc>, window_params = [{transform_indices = @transform_0, window_bounds = array<i64: 2>}, {transform_indices = @transform_1, window_bounds = array<i64: 2, 256>}, {pipeline_mode = #tpu.pipeline_mode<synchronous>, transform_indices = @transform_2, window_bounds = array<i64: 24, 24>}, {pipeline_mode = #tpu.pipeline_mode<synchronous>, transform_indices = @transform_3, window_bounds = array<i64: 24, 1>}, {pipeline_mode = #tpu.pipeline_mode<synchronous>, transform_indices = @transform_4, window_bounds = array<i64: 24, 24>}, {pipeline_mode = #tpu.pipeline_mode<synchronous>, transform_indices = @transform_5, window_bounds = array<i64: 24, 1>}, {pipeline_mode = #tpu.pipeline_mode<synchronous>, transform_indices = @transform_6, window_bounds = array<i64: 24, 24>}, {pipeline_mode = #tpu.pipeline_mode<synchronous>, transform_indices = @transform_7, window_bounds = array<i64: 24, 1>}, {pipeline_mode = #tpu.pipeline_mode<synchronous>, transform_indices = @transform_8, window_bounds = array<i64: 24, 24>}, {pipeline_mode = #tpu.pipeline_mode<synchronous>, transform_indices = @transform_9, window_bounds = array<i64: 24, 1>}, {pipeline_mode = #tpu.pipeline_mode<synchronous>, transform_indices = @transform_10, window_bounds = array<i64: 8, 24>}, {pipeline_mode = #tpu.pipeline_mode<synchronous>, transform_indices = @transform_11, window_bounds = array<i64: 8, 1>}, {transform_indices = @transform_12, window_bounds = array<i64: 2, 256>}]} {
    %c0 = arith.constant 0 : index
    %0 = memref.load %arg1[%c0] : memref<2xf32, #tpu.memory_space<smem>>
    %c1 = arith.constant 1 : index
    %1 = memref.load %arg1[%c1] : memref<2xf32, #tpu.memory_space<smem>>
    %2 = arith.subf %1, %0 : f32
    %cst = arith.constant 1.000000e+00 : f32
    %3 = arith.divf %cst, %2 : f32
    %c0_0 = arith.constant 0 : index
    %c0_1 = arith.constant 0 : index
    %4 = vector.load %arg2[%c0_0, %c0_1] : memref<2x256xf32, #tpu.memory_space<vmem>>, vector<2x256xf32>
    %5 = vector.broadcast %0 : f32 to vector<2x256xf32>
    %6 = arith.subf %4, %5 : vector<2x256xf32>
    %7 = vector.broadcast %3 : f32 to vector<2x256xf32>
    %8 = arith.mulf %6, %7 : vector<2x256xf32>
    %9 = vector.extract_strided_slice %8 {offsets = [0, 0], sizes = [1, 256], strides = [1, 1]} : vector<2x256xf32> to vector<1x256xf32>
    %10 = vector.extract_strided_slice %8 {offsets = [1, 0], sizes = [1, 256], strides = [1, 1]} : vector<2x256xf32> to vector<1x256xf32>
    %c0_2 = arith.constant 0 : index
    %c0_3 = arith.constant 0 : index
    %11 = vector.load %arg3[%c0_2, %c0_3] : memref<24x24xf32, #tpu.memory_space<vmem>>, vector<24x1xf32>
    %12 = vector.broadcast %11 : vector<24x1xf32> to vector<24x256xf32>
    %13 = vector.broadcast %9 : vector<1x256xf32> to vector<24x256xf32>
    %14 = arith.mulf %12, %13 : vector<24x256xf32>
    %c0_4 = arith.constant 0 : index
    %c1_5 = arith.constant 1 : index
    %15 = vector.load %arg3[%c0_4, %c1_5] : memref<24x24xf32, #tpu.memory_space<vmem>>, vector<24x1xf32>
    %16 = vector.broadcast %15 : vector<24x1xf32> to vector<24x256xf32>
    %17 = vector.broadcast %10 : vector<1x256xf32> to vector<24x256xf32>
    %18 = arith.mulf %16, %17 : vector<24x256xf32>
    %19 = arith.addf %14, %18 : vector<24x256xf32>
    %c0_6 = arith.constant 0 : index
    %c0_7 = arith.constant 0 : index
    %20 = vector.load %arg4[%c0_6, %c0_7] : memref<24x1xf32, #tpu.memory_space<vmem>>, vector<24x1xf32>
    %21 = vector.broadcast %20 : vector<24x1xf32> to vector<24x256xf32>
    %22 = arith.addf %19, %21 : vector<24x256xf32>
    %23 = math.tanh %22 : vector<24x256xf32>
    %c0_8 = arith.constant 0 : index
    %c0_9 = arith.constant 0 : index
    %24 = vector.load %arg5[%c0_8, %c0_9] : memref<24x24xf32, #tpu.memory_space<vmem>>, vector<24x24xf32>
    %c0_10 = arith.constant 0 : index
    %c0_11 = arith.constant 0 : index
    %25 = vector.load %arg6[%c0_10, %c0_11] : memref<24x1xf32, #tpu.memory_space<vmem>>, vector<24x1xf32>
    %cst_12 = arith.constant dense<0.000000e+00> : vector<24x256xf32>
    %26 = tpu.matmul %24, %23, %cst_12 {dimension_numbers = #tpu.dot_dimension_numbers<[1], [0], [0], [1], [0, 0, 1, 1], [], []>} : vector<24x24xf32>, vector<24x256xf32>, vector<24x256xf32> -> vector<24x256xf32>
    %27 = vector.broadcast %25 : vector<24x1xf32> to vector<24x256xf32>
    %28 = arith.addf %26, %27 : vector<24x256xf32>
    %29 = math.tanh %28 : vector<24x256xf32>
    %c0_13 = arith.constant 0 : index
    %c0_14 = arith.constant 0 : index
    %30 = vector.load %arg7[%c0_13, %c0_14] : memref<24x24xf32, #tpu.memory_space<vmem>>, vector<24x24xf32>
    %c0_15 = arith.constant 0 : index
    %c0_16 = arith.constant 0 : index
    %31 = vector.load %arg8[%c0_15, %c0_16] : memref<24x1xf32, #tpu.memory_space<vmem>>, vector<24x1xf32>
    %cst_17 = arith.constant dense<0.000000e+00> : vector<24x256xf32>
    %32 = tpu.matmul %30, %29, %cst_17 {dimension_numbers = #tpu.dot_dimension_numbers<[1], [0], [0], [1], [0, 0, 1, 1], [], []>} : vector<24x24xf32>, vector<24x256xf32>, vector<24x256xf32> -> vector<24x256xf32>
    %33 = vector.broadcast %31 : vector<24x1xf32> to vector<24x256xf32>
    %34 = arith.addf %32, %33 : vector<24x256xf32>
    %35 = math.tanh %34 : vector<24x256xf32>
    %c0_18 = arith.constant 0 : index
    %c0_19 = arith.constant 0 : index
    %36 = vector.load %arg9[%c0_18, %c0_19] : memref<24x24xf32, #tpu.memory_space<vmem>>, vector<24x24xf32>
    %c0_20 = arith.constant 0 : index
    %c0_21 = arith.constant 0 : index
    %37 = vector.load %arg10[%c0_20, %c0_21] : memref<24x1xf32, #tpu.memory_space<vmem>>, vector<24x1xf32>
    %cst_22 = arith.constant dense<0.000000e+00> : vector<24x256xf32>
    %38 = tpu.matmul %36, %35, %cst_22 {dimension_numbers = #tpu.dot_dimension_numbers<[1], [0], [0], [1], [0, 0, 1, 1], [], []>} : vector<24x24xf32>, vector<24x256xf32>, vector<24x256xf32> -> vector<24x256xf32>
    %39 = vector.broadcast %37 : vector<24x1xf32> to vector<24x256xf32>
    %40 = arith.addf %38, %39 : vector<24x256xf32>
    %41 = math.tanh %40 : vector<24x256xf32>
    %c0_23 = arith.constant 0 : index
    %c0_24 = arith.constant 0 : index
    %42 = vector.load %arg11[%c0_23, %c0_24] : memref<8x24xf32, #tpu.memory_space<vmem>>, vector<8x24xf32>
    %c0_25 = arith.constant 0 : index
    %c0_26 = arith.constant 0 : index
    %43 = vector.load %arg12[%c0_25, %c0_26] : memref<8x1xf32, #tpu.memory_space<vmem>>, vector<8x1xf32>
    %cst_27 = arith.constant dense<0.000000e+00> : vector<8x256xf32>
    %44 = tpu.matmul %42, %41, %cst_27 {dimension_numbers = #tpu.dot_dimension_numbers<[1], [0], [0], [1], [0, 0, 1, 1], [], []>} : vector<8x24xf32>, vector<24x256xf32>, vector<8x256xf32> -> vector<8x256xf32>
    %45 = vector.broadcast %43 : vector<8x1xf32> to vector<8x256xf32>
    %46 = arith.addf %44, %45 : vector<8x256xf32>
    %47 = vector.extract_strided_slice %46 {offsets = [0, 0], sizes = [2, 256], strides = [1, 1]} : vector<8x256xf32> to vector<2x256xf32>
    %c0_28 = arith.constant 0 : index
    %c0_29 = arith.constant 0 : index
    %48 = vector.load %arg13[%c0_28, %c0_29] : memref<2x256xf32, #tpu.memory_space<vmem>>, vector<2x256xf32>
    tpu.vector_store %arg13[%c0_28, %c0_29], %47 {strides = array<i32>} : memref<2x256xf32, #tpu.memory_space<vmem>>, vector<2x256xf32>,
    return
  }
  func.func @transform_0(%arg0: i32) -> i32 {
    %c0_i32 = arith.constant 0 : i32
    %c0_i32_0 = arith.constant 0 : i32
    return %c0_i32 : i32
  }
  func.func @transform_1(%arg0: i32) -> (i32, i32) {
    %c0_i32 = arith.constant 0 : i32
    %c0_i32_0 = arith.constant 0 : i32
    return %c0_i32, %arg0 : i32, i32
  }
  func.func @transform_2(%arg0: i32) -> (i32, i32) {
    %c0_i32 = arith.constant 0 : i32
    %c0_i32_0 = arith.constant 0 : i32
    %c0_i32_1 = arith.constant 0 : i32
    return %c0_i32, %c0_i32_0 : i32, i32
  }
  func.func @transform_3(%arg0: i32) -> (i32, i32) {
    %c0_i32 = arith.constant 0 : i32
    %c0_i32_0 = arith.constant 0 : i32
    %c0_i32_1 = arith.constant 0 : i32
    return %c0_i32, %c0_i32_0 : i32, i32
  }
  func.func @transform_4(%arg0: i32) -> (i32, i32) {
    %c0_i32 = arith.constant 0 : i32
    %c0_i32_0 = arith.constant 0 : i32
    %c0_i32_1 = arith.constant 0 : i32
    return %c0_i32, %c0_i32_0 : i32, i32
  }
  func.func @transform_5(%arg0: i32) -> (i32, i32) {
    %c0_i32 = arith.constant 0 : i32
    %c0_i32_0 = arith.constant 0 : i32
    %c0_i32_1 = arith.constant 0 : i32
    return %c0_i32, %c0_i32_0 : i32, i32
  }
  func.func @transform_6(%arg0: i32) -> (i32, i32) {
    %c0_i32 = arith.constant 0 : i32
    %c0_i32_0 = arith.constant 0 : i32
    %c0_i32_1 = arith.constant 0 : i32
    return %c0_i32, %c0_i32_0 : i32, i32
  }
  func.func @transform_7(%arg0: i32) -> (i32, i32) {
    %c0_i32 = arith.constant 0 : i32
    %c0_i32_0 = arith.constant 0 : i32
    %c0_i32_1 = arith.constant 0 : i32
    return %c0_i32, %c0_i32_0 : i32, i32
  }
  func.func @transform_8(%arg0: i32) -> (i32, i32) {
    %c0_i32 = arith.constant 0 : i32
    %c0_i32_0 = arith.constant 0 : i32
    %c0_i32_1 = arith.constant 0 : i32
    return %c0_i32, %c0_i32_0 : i32, i32
  }
  func.func @transform_9(%arg0: i32) -> (i32, i32) {
    %c0_i32 = arith.constant 0 : i32
    %c0_i32_0 = arith.constant 0 : i32
    %c0_i32_1 = arith.constant 0 : i32
    return %c0_i32, %c0_i32_0 : i32, i32
  }
  func.func @transform_10(%arg0: i32) -> (i32, i32) {
    %c0_i32 = arith.constant 0 : i32
    %c0_i32_0 = arith.constant 0 : i32
    %c0_i32_1 = arith.constant 0 : i32
    return %c0_i32, %c0_i32_0 : i32, i32
  }
  func.func @transform_11(%arg0: i32) -> (i32, i32) {
    %c0_i32 = arith.constant 0 : i32
    %c0_i32_0 = arith.constant 0 : i32
    %c0_i32_1 = arith.constant 0 : i32
    return %c0_i32, %c0_i32_0 : i32, i32
  }
  func.func @transform_12(%arg0: i32) -> (i32, i32) {
    %c0_i32 = arith.constant 0 : i32
    %c0_i32_0 = arith.constant 0 : i32
    return %c0_i32, %arg0 : i32, i32
  }
}

</mosaic_0001>

<llo_original>
// kernel: tpu_custom_call.1
$region0: #{tpu_custom_call.1}
  #allocation0 [shape = 'u32[]', space=smem, size = 0x4, offset = 0x4, fixed_abs, tag = 'smem constant byte address 0x4 - core index']
  #allocation1 [shape = 'u32[144,128]{1,0:T(1,128)}', space=vmem, size = 0x12000, scoped, tag = 'internal scratch']
  %s0 = inlined_call_operand.hbm [shape: f32[2], index: 0, kind: input, shape index: {}]
  %s1 = inlined_call_operand.vmem [shape: f32[2,512], index: 1, kind: input, shape index: {}]
  %s2 = inlined_call_operand.vmem [shape: f32[24,24], index: 2, kind: input, shape index: {}]
  %s3 = inlined_call_operand.vmem [shape: f32[24,1], index: 3, kind: input, shape index: {}]
  %s4 = inlined_call_operand.vmem [shape: f32[24,24], index: 4, kind: input, shape index: {}]
  %s5 = inlined_call_operand.vmem [shape: f32[24,1], index: 5, kind: input, shape index: {}]
  %s6 = inlined_call_operand.vmem [shape: f32[24,24], index: 6, kind: input, shape index: {}]
  %s7 = inlined_call_operand.vmem [shape: f32[24,1], index: 7, kind: input, shape index: {}]
  %s8 = inlined_call_operand.vmem [shape: f32[24,24], index: 8, kind: input, shape index: {}]
  %s9 = inlined_call_operand.vmem [shape: f32[24,1], index: 9, kind: input, shape index: {}]
  %s10 = inlined_call_operand.vmem [shape: f32[8,24], index: 10, kind: input, shape index: {}]
  %s11 = inlined_call_operand.vmem [shape: f32[8,1], index: 11, kind: input, shape index: {}]
  %s12 = inlined_call_operand.hbm [shape: f32[2,512], index: 12, kind: output, shape index: {}]
  %s13 = sld [smem:[#allocation0]]
  $region85: #{tpu_custom_call.1} parent=0
    _
  %s15 = ssub.s32 1, %s13
  %s16 = scalar_select 0, %s15, %s13
  $region1: #{tpu_custom_call.1} parent=0
    #allocation2 [shape = 'u8[512]{0}', space=smem, size = 0x200, scoped, tag = 'input window, operand 0, single buffered']
    #allocation3 [shape = 's32[2]{0}', space=sflag, size = 0x8, scoped, tag = 'scoped memory for tpu_custom_call.1']
    #allocation4 [shape = 's32[2]{0}', space=sflag, size = 0x8, scoped, tag = 'scoped memory for tpu_custom_call.1']
    #allocation5 [shape = 'u8[4096]{0}', space=vmem, size = 0x1000, scoped, tag = 'output window, operand 0']
    %17 = vsyncpa [#allocation4], 0
    %18 = vsyncpa [#allocation3], 0
    %s19 = scalar_lea.sflag [#allocation3], 1
    %20 = vsyncpa %s19, 0
    loop: start=0, step=1, limit=4
    $region2: #{tpu_custom_call.1} parent=1 // loop_pre_header
      _
    $region3: #{tpu_custom_call.1} parent=1 // loop_header
      %s22 = sphi 0, %s26
      %p23 = scmp.ge.s32.totalorder %s22, 4
      %s30 = sphi 0, %s30
      %s32 = sphi 0, %s30
      %s33 = sphi 0, %s32
      %s47 = sphi 0, %s33
      %s53 = sphi 0, %s55
      %s56 = sphi 0, %s53
      %s57 = sphi 0, %s56
      %s73 = sphi 0, %s57
      %s77 = sphi 0, %s77
      %s79 = sphi 0, %s77
      %s80 = sphi 0, %s79
      %s94 = sphi 0, %s80
      %s98 = sphi 0, %s98
      %s100 = sphi 0, %s98
      %s101 = sphi 0, %s100
      %s115 = sphi 0, %s101
      %s119 = sphi 0, %s119
      %s121 = sphi 0, %s119
      %s122 = sphi 0, %s121
      %s136 = sphi 0, %s122
      %s140 = sphi 0, %s140
      %s142 = sphi 0, %s140
      %s143 = sphi 0, %s142
      %s157 = sphi 0, %s143
      %s161 = sphi 0, %s161
      %s163 = sphi 0, %s161
      %s164 = sphi 0, %s163
      %s178 = sphi 0, %s164
      %s182 = sphi 0, %s182
      %s184 = sphi 0, %s182
      %s185 = sphi 0, %s184
      %s199 = sphi 0, %s185
      %s203 = sphi 0, %s203
      %s205 = sphi 0, %s203
      %s206 = sphi 0, %s205
      %s220 = sphi 0, %s206
      %s224 = sphi 0, %s224
      %s226 = sphi 0, %s224
      %s227 = sphi 0, %s226
      %s241 = sphi 0, %s227
      %s245 = sphi 0, %s245
      %s247 = sphi 0, %s245
      %s248 = sphi 0, %s247
      %s262 = sphi 0, %s248
      %s266 = sphi 0, %s266
      %s268 = sphi 0, %s266
      %s269 = sphi 0, %s268
      %s283 = sphi 0, %s269
      %s289 = sphi 0, %s291
      %s292 = sphi 0, %s289
      %s293 = sphi 0, %s292
      %s309 = sphi 0, %s293
    $region4: #{tpu_custom_call.1} parent=1 // loop_header_branch
      %25 = sbr.rel (%p23) target = $region8
    $region5: #{tpu_custom_call.1} parent=1 // loop_body
      %s27 = ssub.s32 %s22, 1
      %s28 = ssub.s32 %s22, 2
      %s29 = sadd.s32 %s22, 1
      %s31 = sadd.s32 %s30, 1
      %p34 = scmp.eq.s32.totalorder %s22, 1
      %p35 = scmp.ne.s32.totalorder %s30, %s32
      %p36 = scmp.eq.s32.totalorder %s22, 0
      %p37 = por %p35, %p36
      %p38 = scmp.ne.s32.totalorder %s30, %s32
      %p39 = scmp.eq.s32.totalorder %s27, 1
      %p40 = por %p38, %p39
      %p41 = scmp.ne.s32.totalorder %s32, %s33
      %p42 = scmp.eq.s32.totalorder %s27, 0
      %p43 = por %p41, %p42
      %p44 = scmp.ne.s32.totalorder %s32, %s33
      %p45 = scmp.eq.s32.totalorder %s28, 1
      %p46 = por %p44, %p45
      %p48 = scmp.ne.s32.totalorder %s33, %s47
      %p49 = scmp.eq.s32.totalorder %s28, 0
      %p50 = por %p48, %p49
      %s51 = ssub.s32 %s22, %s29
      %p52 = scmp.eq.s32.totalorder %s51, 0
      %s54 = sadd.s32 %s53, 1
      %s55 = scalar_select %p52, %s53, %s54
      %p58 = pneg %p52
      %p59 = scmp.eq.s32.totalorder %s22, 1
      %p60 = por %p58, %p59
      %p61 = scmp.ne.s32.totalorder %s53, %s56
      %p62 = scmp.eq.s32.totalorder %s22, 0
      %p63 = por %p61, %p62
      %p64 = scmp.ne.s32.totalorder %s53, %s56
      %p65 = scmp.eq.s32.totalorder %s27, 1
      %p66 = por %p64, %p65
      %p67 = scmp.ne.s32.totalorder %s56, %s57
      %p68 = scmp.eq.s32.totalorder %s27, 0
      %p69 = por %p67, %p68
      %p70 = scmp.ne.s32.totalorder %s56, %s57
      %p71 = scmp.eq.s32.totalorder %s28, 1
      %p72 = por %p70, %p71
      %p74 = scmp.ne.s32.totalorder %s57, %s73
      %p75 = scmp.eq.s32.totalorder %s28, 0
      %p76 = por %p74, %p75
      %s78 = sadd.s32 %s77, 1
      %p81 = scmp.eq.s32.totalorder %s22, 1
      %p82 = scmp.ne.s32.totalorder %s77, %s79
      %p83 = scmp.eq.s32.totalorder %s22, 0
      %p84 = por %p82, %p83
      %p85 = scmp.ne.s32.totalorder %s77, %s79
      %p86 = scmp.eq.s32.totalorder %s27, 1
      %p87 = por %p85, %p86
      %p88 = scmp.ne.s32.totalorder %s79, %s80
      %p89 = scmp.eq.s32.totalorder %s27, 0
      %p90 = por %p88, %p89
      %p91 = scmp.ne.s32.totalorder %s79, %s80
      %p92 = scmp.eq.s32.totalorder %s28, 1
      %p93 = por %p91, %p92
      %p95 = scmp.ne.s32.totalorder %s80, %s94
      %p96 = scmp.eq.s32.totalorder %s28, 0
      %p97 = por %p95, %p96
      %s99 = sadd.s32 %s98, 1
      %p102 = scmp.eq.s32.totalorder %s22, 1
      %p103 = scmp.ne.s32.totalorder %s98, %s100
      %p104 = scmp.eq.s32.totalorder %s22, 0
      %p105 = por %p103, %p104
      %p106 = scmp.ne.s32.totalorder %s98, %s100
      %p107 = scmp.eq.s32.totalorder %s27, 1
      %p108 = por %p106, %p107
      %p109 = scmp.ne.s32.totalorder %s100, %s101
      %p110 = scmp.eq.s32.totalorder %s27, 0
      %p111 = por %p109, %p110
      %p112 = scmp.ne.s32.totalorder %s100, %s101
      %p113 = scmp.eq.s32.totalorder %s28, 1
      %p114 = por %p112, %p113
      %p116 = scmp.ne.s32.totalorder %s101, %s115
      %p117 = scmp.eq.s32.totalorder %s28, 0
      %p118 = por %p116, %p117
      %s120 = sadd.s32 %s119, 1
      %p123 = scmp.eq.s32.totalorder %s22, 1
      %p124 = scmp.ne.s32.totalorder %s119, %s121
      %p125 = scmp.eq.s32.totalorder %s22, 0
      %p126 = por %p124, %p125
      %p127 = scmp.ne.s32.totalorder %s119, %s121
      %p128 = scmp.eq.s32.totalorder %s27, 1
      %p129 = por %p127, %p128
      %p130 = scmp.ne.s32.totalorder %s121, %s122
      %p131 = scmp.eq.s32.totalorder %s27, 0
      %p132 = por %p130, %p131
      %p133 = scmp.ne.s32.totalorder %s121, %s122
      %p134 = scmp.eq.s32.totalorder %s28, 1
      %p135 = por %p133, %p134
      %p137 = scmp.ne.s32.totalorder %s122, %s136
      %p138 = scmp.eq.s32.totalorder %s28, 0
      %p139 = por %p137, %p138
      %s141 = sadd.s32 %s140, 1
      %p144 = scmp.eq.s32.totalorder %s22, 1
      %p145 = scmp.ne.s32.totalorder %s140, %s142
      %p146 = scmp.eq.s32.totalorder %s22, 0
      %p147 = por %p145, %p146
      %p148 = scmp.ne.s32.totalorder %s140, %s142
      %p149 = scmp.eq.s32.totalorder %s27, 1
      %p150 = por %p148, %p149
      %p151 = scmp.ne.s32.totalorder %s142, %s143
      %p152 = scmp.eq.s32.totalorder %s27, 0
      %p153 = por %p151, %p152
      %p154 = scmp.ne.s32.totalorder %s142, %s143
      %p155 = scmp.eq.s32.totalorder %s28, 1
      %p156 = por %p154, %p155
      %p158 = scmp.ne.s32.totalorder %s143, %s157
      %p159 = scmp.eq.s32.totalorder %s28, 0
      %p160 = por %p158, %p159
      %s162 = sadd.s32 %s161, 1
      %p165 = scmp.eq.s32.totalorder %s22, 1
      %p166 = scmp.ne.s32.totalorder %s161, %s163
      %p167 = scmp.eq.s32.totalorder %s22, 0
      %p168 = por %p166, %p167
      %p169 = scmp.ne.s32.totalorder %s161, %s163
      %p170 = scmp.eq.s32.totalorder %s27, 1
      %p171 = por %p169, %p170
      %p172 = scmp.ne.s32.totalorder %s163, %s164
      %p173 = scmp.eq.s32.totalorder %s27, 0
      %p174 = por %p172, %p173
      %p175 = scmp.ne.s32.totalorder %s163, %s164
      %p176 = scmp.eq.s32.totalorder %s28, 1
      %p177 = por %p175, %p176
      %p179 = scmp.ne.s32.totalorder %s164, %s178
      %p180 = scmp.eq.s32.totalorder %s28, 0
      %p181 = por %p179, %p180
      %s183 = sadd.s32 %s182, 1
      %p186 = scmp.eq.s32.totalorder %s22, 1
      %p187 = scmp.ne.s32.totalorder %s182, %s184
      %p188 = scmp.eq.s32.totalorder %s22, 0
      %p189 = por %p187, %p188
      %p190 = scmp.ne.s32.totalorder %s182, %s184
      %p191 = scmp.eq.s32.totalorder %s27, 1
      %p192 = por %p190, %p191
      %p193 = scmp.ne.s32.totalorder %s184, %s185
      %p194 = scmp.eq.s32.totalorder %s27, 0
      %p195 = por %p193, %p194
      %p196 = scmp.ne.s32.totalorder %s184, %s185
      %p197 = scmp.eq.s32.totalorder %s28, 1
      %p198 = por %p196, %p197
      %p200 = scmp.ne.s32.totalorder %s185, %s199
      %p201 = scmp.eq.s32.totalorder %s28, 0
      %p202 = por %p200, %p201
      %s204 = sadd.s32 %s203, 1
      %p207 = scmp.eq.s32.totalorder %s22, 1
      %p208 = scmp.ne.s32.totalorder %s203, %s205
      %p209 = scmp.eq.s32.totalorder %s22, 0
      %p210 = por %p208, %p209
      %p211 = scmp.ne.s32.totalorder %s203, %s205
      %p212 = scmp.eq.s32.totalorder %s27, 1
      %p213 = por %p211, %p212
      %p214 = scmp.ne.s32.totalorder %s205, %s206
      %p215 = scmp.eq.s32.totalorder %s27, 0
      %p216 = por %p214, %p215
      %p217 = scmp.ne.s32.totalorder %s205, %s206
      %p218 = scmp.eq.s32.totalorder %s28, 1
      %p219 = por %p217, %p218
      %p221 = scmp.ne.s32.totalorder %s206, %s220
      %p222 = scmp.eq.s32.totalorder %s28, 0
      %p223 = por %p221, %p222
      %s225 = sadd.s32 %s224, 1
      %p228 = scmp.eq.s32.totalorder %s22, 1
      %p229 = scmp.ne.s32.totalorder %s224, %s226
      %p230 = scmp.eq.s32.totalorder %s22, 0
      %p231 = por %p229, %p230
      %p232 = scmp.ne.s32.totalorder %s224, %s226
      %p233 = scmp.eq.s32.totalorder %s27, 1
      %p234 = por %p232, %p233
      %p235 = scmp.ne.s32.totalorder %s226, %s227
      %p236 = scmp.eq.s32.totalorder %s27, 0
      %p237 = por %p235, %p236
      %p238 = scmp.ne.s32.totalorder %s226, %s227
      %p239 = scmp.eq.s32.totalorder %s28, 1
      %p240 = por %p238, %p239
      %p242 = scmp.ne.s32.totalorder %s227, %s241
      %p243 = scmp.eq.s32.totalorder %s28, 0
      %p244 = por %p242, %p243
      %s246 = sadd.s32 %s245, 1
      %p249 = scmp.eq.s32.totalorder %s22, 1
      %p250 = scmp.ne.s32.totalorder %s245, %s247
      %p251 = scmp.eq.s32.totalorder %s22, 0
      %p252 = por %p250, %p251
      %p253 = scmp.ne.s32.totalorder %s245, %s247
      %p254 = scmp.eq.s32.totalorder %s27, 1
      %p255 = por %p253, %p254
      %p256 = scmp.ne.s32.totalorder %s247, %s248
      %p257 = scmp.eq.s32.totalorder %s27, 0
      %p258 = por %p256, %p257
      %p259 = scmp.ne.s32.totalorder %s247, %s248
      %p260 = scmp.eq.s32.totalorder %s28, 1
      %p261 = por %p259, %p260
      %p263 = scmp.ne.s32.totalorder %s248, %s262
      %p264 = scmp.eq.s32.totalorder %s28, 0
      %p265 = por %p263, %p264
      %s267 = sadd.s32 %s266, 1
      %p270 = scmp.eq.s32.totalorder %s22, 1
      %p271 = scmp.ne.s32.totalorder %s266, %s268
      %p272 = scmp.eq.s32.totalorder %s22, 0
      %p273 = por %p271, %p272
      %p274 = scmp.ne.s32.totalorder %s266, %s268
      %p275 = scmp.eq.s32.totalorder %s27, 1
      %p276 = por %p274, %p275
      %p277 = scmp.ne.s32.totalorder %s268, %s269
      %p278 = scmp.eq.s32.totalorder %s27, 0
      %p279 = por %p277, %p278
      %p280 = scmp.ne.s32.totalorder %s268, %s269
      %p281 = scmp.eq.s32.totalorder %s28, 1
      %p282 = por %p280, %p281
      %p284 = scmp.ne.s32.totalorder %s269, %s283
      %p285 = scmp.eq.s32.totalorder %s28, 0
      %p286 = por %p284, %p285
      %s287 = ssub.s32 %s22, %s29
      %p288 = scmp.eq.s32.totalorder %s287, 0
      %s290 = sadd.s32 %s289, 1
      %s291 = scalar_select %p288, %s289, %s290
      %p294 = pneg %p288
      %p295 = scmp.eq.s32.totalorder %s22, 1
      %p296 = por %p294, %p295
      %p297 = scmp.ne.s32.totalorder %s289, %s292
      %p298 = scmp.eq.s32.totalorder %s22, 0
      %p299 = por %p297, %p298
      %p300 = scmp.ne.s32.totalorder %s289, %s292
      %p301 = scmp.eq.s32.totalorder %s27, 1
      %p302 = por %p300, %p301
      %p303 = scmp.ne.s32.totalorder %s292, %s293
      %p304 = scmp.eq.s32.totalorder %s27, 0
      %p305 = por %p303, %p304
      %p306 = scmp.ne.s32.totalorder %s292, %s293
      %p307 = scmp.eq.s32.totalorder %s28, 1
      %p308 = por %p306, %p307
      %p310 = scmp.ne.s32.totalorder %s293, %s309
      %p311 = scmp.eq.s32.totalorder %s28, 0
      %p312 = por %p310, %p311
      %p313 = scmp.le.s32.totalorder 1, %s22
      %p314 = scmp.lt.s32.totalorder %s22, 3
      %p315 = pnand %p313, %p314
      %p316 = pneg %p315
      // Predicated region
      $region9: #{tpu_custom_call.1} parent=5 // pred_check
        _
      $region10: #{tpu_custom_call.1} parent=5 // pred_check_branch
        %318 = sbr.rel (%p315) target = $region12
      $region11: #{tpu_custom_call.1} parent=5 // pred_region
        %s319 = ssub.s32 %s22, 1
        // Predicated region
        $region13: #{tpu_custom_call.1} parent=11 // pred_check
          %p320 = pneg %p43
        $region14: #{tpu_custom_call.1} parent=11 // pred_check_branch
          %322 = sbr.rel (%p320) target = $region16
        $region15: #{tpu_custom_call.1} parent=11 // pred_region
          %s324 = ssub.s32 16, 16
          %325 = vsyncadd [#allocation4], %s324
          %328 = dma.hbm_to_smem %s0, 16, [#allocation2], [#allocation4]
        $region16: #{tpu_custom_call.1} parent=11 // pred_fallthru
          _
        // Predicated region
        $region17: #{tpu_custom_call.1} parent=11 // pred_check
          %p329 = pneg %p90
        $region18: #{tpu_custom_call.1} parent=11 // pred_check_branch
          %331 = sbr.rel (%p329) target = $region20
        $region19: #{tpu_custom_call.1} parent=11 // pred_region
          _
        $region20: #{tpu_custom_call.1} parent=11 // pred_fallthru
          _
        // Predicated region
        $region21: #{tpu_custom_call.1} parent=11 // pred_check
          %p332 = pneg %p111
        $region22: #{tpu_custom_call.1} parent=11 // pred_check_branch
          %334 = sbr.rel (%p332) target = $region24
        $region23: #{tpu_custom_call.1} parent=11 // pred_region
          _
        $region24: #{tpu_custom_call.1} parent=11 // pred_fallthru
          _
        // Predicated region
        $region25: #{tpu_custom_call.1} parent=11 // pred_check
          %p335 = pneg %p132
        $region26: #{tpu_custom_call.1} parent=11 // pred_check_branch
          %337 = sbr.rel (%p335) target = $region28
        $region27: #{tpu_custom_call.1} parent=11 // pred_region
          _
        $region28: #{tpu_custom_call.1} parent=11 // pred_fallthru
          _
        // Predicated region
        $region29: #{tpu_custom_call.1} parent=11 // pred_check
          %p338 = pneg %p153
        $region30: #{tpu_custom_call.1} parent=11 // pred_check_branch
          %340 = sbr.rel (%p338) target = $region32
        $region31: #{tpu_custom_call.1} parent=11 // pred_region
          _
        $region32: #{tpu_custom_call.1} parent=11 // pred_fallthru
          _
        // Predicated region
        $region33: #{tpu_custom_call.1} parent=11 // pred_check
          %p341 = pneg %p174
        $region34: #{tpu_custom_call.1} parent=11 // pred_check_branch
          %343 = sbr.rel (%p341) target = $region36
        $region35: #{tpu_custom_call.1} parent=11 // pred_region
          _
        $region36: #{tpu_custom_call.1} parent=11 // pred_fallthru
          _
        // Predicated region
        $region37: #{tpu_custom_call.1} parent=11 // pred_check
          %p344 = pneg %p195
        $region38: #{tpu_custom_call.1} parent=11 // pred_check_branch
          %346 = sbr.rel (%p344) target = $region40
        $region39: #{tpu_custom_call.1} parent=11 // pred_region
          _
        $region40: #{tpu_custom_call.1} parent=11 // pred_fallthru
          _
        // Predicated region
        $region41: #{tpu_custom_call.1} parent=11 // pred_check
          %p347 = pneg %p216
        $region42: #{tpu_custom_call.1} parent=11 // pred_check_branch
          %349 = sbr.rel (%p347) target = $region44
        $region43: #{tpu_custom_call.1} parent=11 // pred_region
          _
        $region44: #{tpu_custom_call.1} parent=11 // pred_fallthru
          _
        // Predicated region
        $region45: #{tpu_custom_call.1} parent=11 // pred_check
          %p350 = pneg %p237
        $region46: #{tpu_custom_call.1} parent=11 // pred_check_branch
          %352 = sbr.rel (%p350) target = $region48
        $region47: #{tpu_custom_call.1} parent=11 // pred_region
          _
        $region48: #{tpu_custom_call.1} parent=11 // pred_fallthru
          _
        // Predicated region
        $region49: #{tpu_custom_call.1} parent=11 // pred_check
          %p353 = pneg %p258
        $region50: #{tpu_custom_call.1} parent=11 // pred_check_branch
          %355 = sbr.rel (%p353) target = $region52
        $region51: #{tpu_custom_call.1} parent=11 // pred_region
          _
        $region52: #{tpu_custom_call.1} parent=11 // pred_fallthru
          _
        // Predicated region
        $region53: #{tpu_custom_call.1} parent=11 // pred_check
          %p356 = pneg %p279
        $region54: #{tpu_custom_call.1} parent=11 // pred_check_branch
          %358 = sbr.rel (%p356) target = $region56
        $region55: #{tpu_custom_call.1} parent=11 // pred_region
          _
        $region56: #{tpu_custom_call.1} parent=11 // pred_fallthru
          _
      $region12: #{tpu_custom_call.1} parent=5 // pred_fallthru
        _
      %p359 = scmp.lt.s32.totalorder %s22, 2
      // Predicated region
      $region57: #{tpu_custom_call.1} parent=5 // pred_check
        %p360 = pneg %p359
      $region58: #{tpu_custom_call.1} parent=5 // pred_check_branch
        %362 = sbr.rel (%p360) target = $region60
      $region59: #{tpu_custom_call.1} parent=5 // pred_region
        // Predicated region
        $region61: #{tpu_custom_call.1} parent=59 // pred_check
          %p363 = pneg %p63
        $region62: #{tpu_custom_call.1} parent=59 // pred_check_branch
          %365 = sbr.rel (%p363) target = $region64
        $region63: #{tpu_custom_call.1} parent=59 // pred_region
          %s366 = smul.u32 2, %s22
          %p367 = scmp.lt.s32.totalorder %s366, 3
          %s368 = scalar_select %p367, %s366, 3
          %s369 = smul.addr %s368, 2
          %s370 = scalar_lea.vmem %s1, %s369
          %s371 = smul.u32 2, %s22
        $region64: #{tpu_custom_call.1} parent=59 // pred_fallthru
          _
      $region60: #{tpu_custom_call.1} parent=5 // pred_fallthru
        _
      %p372 = scmp.le.s32.totalorder 1, %s22
      %p373 = scmp.lt.s32.totalorder %s22, 3
      %p374 = pnand %p372, %p373
      %p375 = pneg %p374
      // Predicated region
      $region65: #{tpu_custom_call.1} parent=5 // pred_check
        _
      $region66: #{tpu_custom_call.1} parent=5 // pred_check_branch
        %377 = sbr.rel (%p374) target = $region68
      $region67: #{tpu_custom_call.1} parent=5 // pred_region
        %s378 = ssub.s32 %s22, 1
        // Predicated region
        $region69: #{tpu_custom_call.1} parent=67 // pred_check
          %p379 = pneg %p43
        $region70: #{tpu_custom_call.1} parent=67 // pred_check_branch
          %381 = sbr.rel (%p379) target = $region72
        $region71: #{tpu_custom_call.1} parent=67 // pred_region
          %382 = dma.done [#allocation4], 16
        $region72: #{tpu_custom_call.1} parent=67 // pred_fallthru
          _
        %383 = sfence
        %p384 = pneg %p43
        %p385 = pneg %p40
        %s386 = smul.u32 2, %s27
        %p387 = scmp.lt.s32.totalorder %s386, 3
        %s388 = scalar_select %p387, %s386, 3
        %s389 = smul.addr %s388, 2
        %s390 = scalar_lea.vmem %s1, %s389
        %p391 = pneg %p69
        %p392 = pneg %p66
        %p393 = pneg %p90
        %p394 = pneg %p87
        %p395 = pneg %p111
        %p396 = pneg %p108
        %p397 = pneg %p132
        %p398 = pneg %p129
        %p399 = pneg %p153
        %p400 = pneg %p150
        %p401 = pneg %p174
        %p402 = pneg %p171
        %p403 = pneg %p195
        %p404 = pneg %p192
        %p405 = pneg %p216
        %p406 = pneg %p213
        %p407 = pneg %p237
        %p408 = pneg %p234
        %p409 = pneg %p258
        %p410 = pneg %p255
        %p411 = pneg %p279
        %p412 = pneg %p276
        %p413 = pneg %p305
        %p414 = pneg %p302
        %s415 = sand.u32 %s292, 1
        %s416 = scalar_lea.sflag [#allocation3], %s415
        %s417 = sand.u32 %s292, 1
        %s418 = smul.addr %s417, 4
        %s419 = scalar_lea.vmem [#allocation5], %s418
        %s420 = smul.u32 2, %s27
        %p421 = scmp.lt.s32.totalorder %s420, 3
        %s422 = scalar_select %p421, %s420, 3
        %s423 = smul.addr %s422, 2
        %s424 = scalar_lea.vmem %s1, %s423
        %s425 = smul.u32 2, %s27
        %s426 = smul.u32 2, %s27
        %s427 = sld [smem:[#allocation2]]
        %s428 = sld [smem:[#allocation2 + $0x1]]
        %s429 = ssub.f32 %s428, %s427
        %v430 = vstv %s429
        %v431 = vrcp.pop %v430
        %s432 = vtos %v431
        %v433 = vld [vmem:[%s424] sm:$0xf]
        %v434 = vstv %s427
        %v435 = vsub.f32 %v433, %v434
        %v436 = vstv %s432
        %v437 = vmul.f32 %v435, %v436
        %v438 = vld [vmem:[%s2] sm:$0xff]
        %v439 = vld [vmem:[%s2 + $0x8] sm:$0xff]
        %v440 = vld [vmem:[%s2 + $0x10] sm:$0xff]
        %442 = vset.pattern.permute.xlu0 0
        %443 = vperm.xlu0 %442, %v438
        %v444 = vpop.permute.xlu0 %443
        %447 = vset.pattern.permute.xlu0 0
        %448 = vperm.xlu0 %447, %v439
        %v449 = vpop.permute.xlu0 %448
        %452 = vset.pattern.permute.xlu0 0
        %453 = vperm.xlu0 %452, %v440
        %v454 = vpop.permute.xlu0 %453
        %v457 = vlaneseq
        %v458 = vshrl.u32 %v457, 7
        %v459 = vsub.s32 0, %v458
        %v460 = vrot.slane %v437, %v459
        %v461 = vlaneseq
        %v462 = vshrl.u32 %v461, 7
        %v463 = vsub.s32 2, %v462
        %v464 = vrot.slane %v437, %v463
        %v467 = vlaneseq
        %v468 = vshrl.u32 %v467, 7
        %v469 = vsub.s32 0, %v468
        %v470 = vrot.slane %v460, %v469
        %v471 = vlaneseq
        %v472 = vshrl.u32 %v471, 7
        %v473 = vsub.s32 0, %v472
        %v474 = vrot.slane %v464, %v473
        %v475 = vmul.f32 %v444, %v470
        %v476 = vmul.f32 %v444, %v474
        %v477 = vmul.f32 %v449, %v470
        %v478 = vmul.f32 %v449, %v474
        %v479 = vmul.f32 %v454, %v470
        %v480 = vmul.f32 %v454, %v474
        %481 = vset.pattern.permute.xlu0 1
        %482 = vperm.xlu0 %481, %v438
        %v483 = vpop.permute.xlu0 %482
        %485 = vset.pattern.permute.xlu0 1
        %486 = vperm.xlu0 %485, %v439
        %v487 = vpop.permute.xlu0 %486
        %489 = vset.pattern.permute.xlu0 1
        %490 = vperm.xlu0 %489, %v440
        %v491 = vpop.permute.xlu0 %490
        %v493 = vlaneseq
        %v494 = vshrl.u32 %v493, 7
        %v495 = vsub.s32 1, %v494
        %v496 = vrot.slane %v437, %v495
        %v497 = vlaneseq
        %v498 = vshrl.u32 %v497, 7
        %v499 = vsub.s32 3, %v498
        %v500 = vrot.slane %v437, %v499
        %v503 = vlaneseq
        %v504 = vshrl.u32 %v503, 7
        %v505 = vsub.s32 1, %v504
        %v506 = vrot.slane %v496, %v505
        %v507 = vlaneseq
        %v508 = vshrl.u32 %v507, 7
        %v509 = vsub.s32 1, %v508
        %v510 = vrot.slane %v500, %v509
        %v511 = vmul.f32 %v483, %v506
        %v512 = vmul.f32 %v483, %v510
        %v513 = vmul.f32 %v487, %v506
        %v514 = vmul.f32 %v487, %v510
        %v515 = vmul.f32 %v491, %v506
        %v516 = vmul.f32 %v491, %v510
        %v517 = vadd.f32 %v475, %v511
        %v518 = vadd.f32 %v476, %v512
        %v519 = vadd.f32 %v477, %v513
        %v520 = vadd.f32 %v478, %v514
        %v521 = vadd.f32 %v479, %v515
        %v522 = vadd.f32 %v480, %v516
        %v523 = vld [vmem:[%s3] sm:$0xff]
        %v524 = vld [vmem:[%s3 + $0x8] sm:$0xff]
        %v525 = vld [vmem:[%s3 + $0x10] sm:$0xff]
        %527 = vset.pattern.permute.xlu0 0
        %528 = vperm.xlu0 %527, %v523
        %v529 = vpop.permute.xlu0 %528
        %532 = vset.pattern.permute.xlu0 0
        %533 = vperm.xlu0 %532, %v524
        %v534 = vpop.permute.xlu0 %533
        %537 = vset.pattern.permute.xlu0 0
        %538 = vperm.xlu0 %537, %v525
        %v539 = vpop.permute.xlu0 %538
        %v541 = vadd.f32 %v517, %v529
        %v542 = vadd.f32 %v518, %v529
        %v543 = vadd.f32 %v519, %v534
        %v544 = vadd.f32 %v520, %v534
        %v545 = vadd.f32 %v521, %v539
        %v546 = vadd.f32 %v522, %v539
        %v547 = vtanh.pop %v541
        %v548 = vtanh.pop %v542
        %v549 = vtanh.pop %v543
        %v550 = vtanh.pop %v544
        %v551 = vtanh.pop %v545
        %v552 = vtanh.pop %v546
        %v553 = vld [vmem:[%s4] sm:$0xff]
        %v554 = vld [vmem:[%s4 + $0x8] sm:$0xff]
        %v555 = vld [vmem:[%s4 + $0x10] sm:$0xff]
        %v556 = vld [vmem:[%s5] sm:$0xff]
        %v557 = vld [vmem:[%s5 + $0x8] sm:$0xff]
        %v558 = vld [vmem:[%s5 + $0x10] sm:$0xff]
        %560 = vset.pattern.permute.xlu0 0
        %561 = vperm.xlu0 %560, %v556
        %v562 = vpop.permute.xlu0 %561
        %565 = vset.pattern.permute.xlu0 0
        %566 = vperm.xlu0 %565, %v557
        %v567 = vpop.permute.xlu0 %566
        %570 = vset.pattern.permute.xlu0 0
        %571 = vperm.xlu0 %570, %v558
        %v572 = vpop.permute.xlu0 %571
        %vm574 = vcmask 195584
        %v576 = vsel %vm574, %v553, 0
        %v579 = vsel %vm574, %v554, 0
        %v582 = vsel %vm574, %v555, 0
        %584 = vmatprep.subr.mxu0 %v548
        %585 = vmatpush1.msra.mxu0 %v547
        %586 = vmatprep.subr.mxu0 %v550
        %587 = vmatpush1.msra.mxu0 %v549
        %588 = vmatprep.subr.mxu0 %v552
        %589 = vmatpush1.msra.mxu0 %v551
        %590 = vmatprep.subr.mxu0 0.0
        %591 = vmatpush1.msra.mxu0 0.0
        %592 = vmatprep.subr.mxu0 0.0
        %593 = vmatpush1.msra.mxu0 0.0
        %594 = vmatprep.subr.mxu0 0.0
        %595 = vmatpush1.msra.mxu0 0.0
        %596 = vmatprep.subr.mxu0 0.0
        %597 = vmatpush1.msra.mxu0 0.0
        %598 = vmatprep.subr.mxu0 0.0
        %599 = vmatpush1.msra.mxu0 0.0
        %600 = vmatprep.subr.mxu0 0.0
        %601 = vmatpush1.msra.mxu0 0.0
        %602 = vmatprep.subr.mxu0 0.0
        %603 = vmatpush1.msra.mxu0 0.0
        %604 = vmatprep.subr.mxu0 0.0
        %605 = vmatpush1.msra.mxu0 0.0
        %606 = vmatprep.subr.mxu0 0.0
        %607 = vmatpush1.msra.mxu0 0.0
        %608 = vmatprep.subr.mxu0 0.0
        %609 = vmatpush1.msra.mxu0 0.0
        %610 = vmatprep.subr.mxu0 0.0
        %611 = vmatpush1.msra.mxu0 0.0
        %612 = vmatprep.subr.mxu0 0.0
        %613 = vmatpush1.msra.mxu0 0.0
        %614 = vmatprep.subr.mxu0 0.0
        %615 = vmatpush1.msra.mxu0 0.0
        %616 = vmatprep.subr.mxu0 0.0
        %617 = vmatpush1.msra.mxu0 0.0
        %618 = vmatprep.subr.mxu0 0.0
        %619 = vmatpush1.msra.mxu0 0.0
        %620 = vmatprep.subr.mxu0 0.0
        %621 = vmatpush1.msra.mxu0 0.0
        %622 = vmatprep.subr.mxu0 0.0
        %623 = vmatpush1.msra.mxu0 0.0
        %624 = vmatprep.subr.mxu0 0.0
        %625 = vmatpush1.msra.mxu0 0.0
        %626 = vmatprep.subr.mxu0 0.0
        %627 = vmatpush1.msra.mxu0 0.0
        %628 = vmatprep.subr.mxu0 0.0
        %629 = vmatpush1.msra.mxu0 0.0
        %630 = vmatprep.subr.mxu0 0.0
        %631 = vmatpush1.msra.mxu0 0.0
        %632 = vmatprep.subr.mxu0 0.0
        %633 = vmatpush1.msra.mxu0 0.0
        %634 = vmatprep.subr.mxu0 0.0
        %635 = vmatpush1.msra.mxu0 0.0
        %636 = vmatprep.subr.mxu0 0.0
        %637 = vmatpush1.msra.mxu0 0.0
        %638 = vmatprep.subr.mxu0 0.0
        %639 = vmatpush1.msra.mxu0 0.0
        %640 = vmatprep.subr.mxu0 0.0
        %641 = vmatpush1.msra.mxu0 0.0
        %642 = vmatprep.subr.mxu0 0.0
        %643 = vmatpush1.msra.mxu0 0.0
        %644 = vmatprep.subr.mxu0 0.0
        %645 = vmatpush1.msra.mxu0 0.0
        %646 = vmatprep.subr.mxu0 0.0
        %647 = vmatpush1.msra.mxu0 0.0
        %648 = vmatprep.mubr.f32.mxu0 0.0
        %649 = vmatmul.mubr.f32.gmra.mrb[0].mxu0 %v576
        %v650 = vpop.f32.mrb[0].mxu0
        %v651 = vadd.f32 %v562, %v650
        %v652 = vpop.f32.mrb[0].mxu0
        %v653 = vadd.f32 %v562, %v652
        %654 = vmatprep.mubr.f32.mxu0 0.0
        %655 = vmatmul.mubr.f32.gmra.mrb[0].mxu0 %v579
        %v656 = vpop.f32.mrb[0].mxu0
        %v657 = vadd.f32 %v567, %v656
        %v658 = vpop.f32.mrb[0].mxu0
        %v659 = vadd.f32 %v567, %v658
        %660 = vmatprep.mubr.f32.mxu0 0.0
        %661 = vmatmul.mubr.f32.gmra.mrb[0].mxu0 %v582
        %v662 = vpop.f32.mrb[0].mxu0
        %v663 = vadd.f32 %v572, %v662
        %v664 = vpop.f32.mrb[0].mxu0
        %v665 = vadd.f32 %v572, %v664
        %666 = vdwg.mxu0
        %v667 = vtanh.pop %v651
        %v668 = vtanh.pop %v653
        %v669 = vtanh.pop %v657
        %v670 = vtanh.pop %v659
        %v671 = vtanh.pop %v663
        %v672 = vtanh.pop %v665
        %v673 = vld [vmem:[%s6] sm:$0xff]
        %v674 = vld [vmem:[%s6 + $0x8] sm:$0xff]
        %v675 = vld [vmem:[%s6 + $0x10] sm:$0xff]
        %v676 = vld [vmem:[%s7] sm:$0xff]
        %v677 = vld [vmem:[%s7 + $0x8] sm:$0xff]
        %v678 = vld [vmem:[%s7 + $0x10] sm:$0xff]
        %680 = vset.pattern.permute.xlu0 0
        %681 = vperm.xlu0 %680, %v676
        %v682 = vpop.permute.xlu0 %681
        %685 = vset.pattern.permute.xlu0 0
        %686 = vperm.xlu0 %685, %v677
        %v687 = vpop.permute.xlu0 %686
        %690 = vset.pattern.permute.xlu0 0
        %691 = vperm.xlu0 %690, %v678
        %v692 = vpop.permute.xlu0 %691
        %v695 = vsel %vm574, %v673, 0
        %v698 = vsel %vm574, %v674, 0
        %v701 = vsel %vm574, %v675, 0
        %703 = vmatprep.subr.mxu0 %v668
        %704 = vmatpush1.msra.mxu0 %v667
        %705 = vmatprep.subr.mxu0 %v670
        %706 = vmatpush1.msra.mxu0 %v669
        %707 = vmatprep.subr.mxu0 %v672
        %708 = vmatpush1.msra.mxu0 %v671
        %709 = vmatprep.subr.mxu0 0.0
        %710 = vmatpush1.msra.mxu0 0.0
        %711 = vmatprep.subr.mxu0 0.0
        %712 = vmatpush1.msra.mxu0 0.0
        %713 = vmatprep.subr.mxu0 0.0
        %714 = vmatpush1.msra.mxu0 0.0
        %715 = vmatprep.subr.mxu0 0.0
        %716 = vmatpush1.msra.mxu0 0.0
        %717 = vmatprep.subr.mxu0 0.0
        %718 = vmatpush1.msra.mxu0 0.0
        %719 = vmatprep.subr.mxu0 0.0
        %720 = vmatpush1.msra.mxu0 0.0
        %721 = vmatprep.subr.mxu0 0.0
        %722 = vmatpush1.msra.mxu0 0.0
        %723 = vmatprep.subr.mxu0 0.0
        %724 = vmatpush1.msra.mxu0 0.0
        %725 = vmatprep.subr.mxu0 0.0
        %726 = vmatpush1.msra.mxu0 0.0
        %727 = vmatprep.subr.mxu0 0.0
        %728 = vmatpush1.msra.mxu0 0.0
        %729 = vmatprep.subr.mxu0 0.0
        %730 = vmatpush1.msra.mxu0 0.0
        %731 = vmatprep.subr.mxu0 0.0
        %732 = vmatpush1.msra.mxu0 0.0
        %733 = vmatprep.subr.mxu0 0.0
        %734 = vmatpush1.msra.mxu0 0.0
        %735 = vmatprep.subr.mxu0 0.0
        %736 = vmatpush1.msra.mxu0 0.0
        %737 = vmatprep.subr.mxu0 0.0
        %738 = vmatpush1.msra.mxu0 0.0
        %739 = vmatprep.subr.mxu0 0.0
        %740 = vmatpush1.msra.mxu0 0.0
        %741 = vmatprep.subr.mxu0 0.0
        %742 = vmatpush1.msra.mxu0 0.0
        %743 = vmatprep.subr.mxu0 0.0
        %744 = vmatpush1.msra.mxu0 0.0
        %745 = vmatprep.subr.mxu0 0.0
        %746 = vmatpush1.msra.mxu0 0.0
        %747 = vmatprep.subr.mxu0 0.0
        %748 = vmatpush1.msra.mxu0 0.0
        %749 = vmatprep.subr.mxu0 0.0
        %750 = vmatpush1.msra.mxu0 0.0
        %751 = vmatprep.subr.mxu0 0.0
        %752 = vmatpush1.msra.mxu0 0.0
        %753 = vmatprep.subr.mxu0 0.0
        %754 = vmatpush1.msra.mxu0 0.0
        %755 = vmatprep.subr.mxu0 0.0
        %756 = vmatpush1.msra.mxu0 0.0
        %757 = vmatprep.subr.mxu0 0.0
        %758 = vmatpush1.msra.mxu0 0.0
        %759 = vmatprep.subr.mxu0 0.0
        %760 = vmatpush1.msra.mxu0 0.0
        %761 = vmatprep.subr.mxu0 0.0
        %762 = vmatpush1.msra.mxu0 0.0
        %763 = vmatprep.subr.mxu0 0.0
        %764 = vmatpush1.msra.mxu0 0.0
        %765 = vmatprep.subr.mxu0 0.0
        %766 = vmatpush1.msra.mxu0 0.0
        %767 = vmatprep.mubr.f32.mxu0 0.0
        %768 = vmatmul.mubr.f32.gmra.mrb[0].mxu0 %v695
        %v769 = vpop.f32.mrb[0].mxu0
        %v770 = vadd.f32 %v682, %v769
        %v771 = vpop.f32.mrb[0].mxu0
        %v772 = vadd.f32 %v682, %v771
        %773 = vmatprep.mubr.f32.mxu0 0.0
        %774 = vmatmul.mubr.f32.gmra.mrb[0].mxu0 %v698
        %v775 = vpop.f32.mrb[0].mxu0
        %v776 = vadd.f32 %v687, %v775
        %v777 = vpop.f32.mrb[0].mxu0
        %v778 = vadd.f32 %v687, %v777
        %779 = vmatprep.mubr.f32.mxu0 0.0
        %780 = vmatmul.mubr.f32.gmra.mrb[0].mxu0 %v701
        %v781 = vpop.f32.mrb[0].mxu0
        %v782 = vadd.f32 %v692, %v781
        %v783 = vpop.f32.mrb[0].mxu0
        %v784 = vadd.f32 %v692, %v783
        %785 = vdwg.mxu0
        %v786 = vtanh.pop %v770
        %v787 = vtanh.pop %v772
        %v788 = vtanh.pop %v776
        %v789 = vtanh.pop %v778
        %v790 = vtanh.pop %v782
        %v791 = vtanh.pop %v784
        %v792 = vld [vmem:[%s8] sm:$0xff]
        %v793 = vld [vmem:[%s8 + $0x8] sm:$0xff]
        %v794 = vld [vmem:[%s8 + $0x10] sm:$0xff]
        %v795 = vld [vmem:[%s9] sm:$0xff]
        %v796 = vld [vmem:[%s9 + $0x8] sm:$0xff]
        %v797 = vld [vmem:[%s9 + $0x10] sm:$0xff]
        %799 = vset.pattern.permute.xlu0 0
        %800 = vperm.xlu0 %799, %v795
        %v801 = vpop.permute.xlu0 %800
        %804 = vset.pattern.permute.xlu0 0
        %805 = vperm.xlu0 %804, %v796
        %v806 = vpop.permute.xlu0 %805
        %809 = vset.pattern.permute.xlu0 0
        %810 = vperm.xlu0 %809, %v797
        %v811 = vpop.permute.xlu0 %810
        %v814 = vsel %vm574, %v792, 0
        %v817 = vsel %vm574, %v793, 0
        %v820 = vsel %vm574, %v794, 0
        %822 = vmatprep.subr.mxu0 %v787
        %823 = vmatpush1.msra.mxu0 %v786
        %824 = vmatprep.subr.mxu0 %v789
        %825 = vmatpush1.msra.mxu0 %v788
        %826 = vmatprep.subr.mxu0 %v791
        %827 = vmatpush1.msra.mxu0 %v790
        %828 = vmatprep.subr.mxu0 0.0
        %829 = vmatpush1.msra.mxu0 0.0
        %830 = vmatprep.subr.mxu0 0.0
        %831 = vmatpush1.msra.mxu0 0.0
        %832 = vmatprep.subr.mxu0 0.0
        %833 = vmatpush1.msra.mxu0 0.0
        %834 = vmatprep.subr.mxu0 0.0
        %835 = vmatpush1.msra.mxu0 0.0
        %836 = vmatprep.subr.mxu0 0.0
        %837 = vmatpush1.msra.mxu0 0.0
        %838 = vmatprep.subr.mxu0 0.0
        %839 = vmatpush1.msra.mxu0 0.0
        %840 = vmatprep.subr.mxu0 0.0
        %841 = vmatpush1.msra.mxu0 0.0
        %842 = vmatprep.subr.mxu0 0.0
        %843 = vmatpush1.msra.mxu0 0.0
        %844 = vmatprep.subr.mxu0 0.0
        %845 = vmatpush1.msra.mxu0 0.0
        %846 = vmatprep.subr.mxu0 0.0
        %847 = vmatpush1.msra.mxu0 0.0
        %848 = vmatprep.subr.mxu0 0.0
        %849 = vmatpush1.msra.mxu0 0.0
        %850 = vmatprep.subr.mxu0 0.0
        %851 = vmatpush1.msra.mxu0 0.0
        %852 = vmatprep.subr.mxu0 0.0
        %853 = vmatpush1.msra.mxu0 0.0
        %854 = vmatprep.subr.mxu0 0.0
        %855 = vmatpush1.msra.mxu0 0.0
        %856 = vmatprep.subr.mxu0 0.0
        %857 = vmatpush1.msra.mxu0 0.0
        %858 = vmatprep.subr.mxu0 0.0
        %859 = vmatpush1.msra.mxu0 0.0
        %860 = vmatprep.subr.mxu0 0.0
        %861 = vmatpush1.msra.mxu0 0.0
        %862 = vmatprep.subr.mxu0 0.0
        %863 = vmatpush1.msra.mxu0 0.0
        %864 = vmatprep.subr.mxu0 0.0
        %865 = vmatpush1.msra.mxu0 0.0
        %866 = vmatprep.subr.mxu0 0.0
        %867 = vmatpush1.msra.mxu0 0.0
        %868 = vmatprep.subr.mxu0 0.0
        %869 = vmatpush1.msra.mxu0 0.0
        %870 = vmatprep.subr.mxu0 0.0
        %871 = vmatpush1.msra.mxu0 0.0
        %872 = vmatprep.subr.mxu0 0.0
        %873 = vmatpush1.msra.mxu0 0.0
        %874 = vmatprep.subr.mxu0 0.0
        %875 = vmatpush1.msra.mxu0 0.0
        %876 = vmatprep.subr.mxu0 0.0
        %877 = vmatpush1.msra.mxu0 0.0
        %878 = vmatprep.subr.mxu0 0.0
        %879 = vmatpush1.msra.mxu0 0.0
        %880 = vmatprep.subr.mxu0 0.0
        %881 = vmatpush1.msra.mxu0 0.0
        %882 = vmatprep.subr.mxu0 0.0
        %883 = vmatpush1.msra.mxu0 0.0
        %884 = vmatprep.subr.mxu0 0.0
        %885 = vmatpush1.msra.mxu0 0.0
        %886 = vmatprep.mubr.f32.mxu0 0.0
        %887 = vmatmul.mubr.f32.gmra.mrb[0].mxu0 %v814
        %v888 = vpop.f32.mrb[0].mxu0
        %v889 = vadd.f32 %v801, %v888
        %v890 = vpop.f32.mrb[0].mxu0
        %v891 = vadd.f32 %v801, %v890
        %892 = vmatprep.mubr.f32.mxu0 0.0
        %893 = vmatmul.mubr.f32.gmra.mrb[0].mxu0 %v817
        %v894 = vpop.f32.mrb[0].mxu0
        %v895 = vadd.f32 %v806, %v894
        %v896 = vpop.f32.mrb[0].mxu0
        %v897 = vadd.f32 %v806, %v896
        %898 = vmatprep.mubr.f32.mxu0 0.0
        %899 = vmatmul.mubr.f32.gmra.mrb[0].mxu0 %v820
        %v900 = vpop.f32.mrb[0].mxu0
        %v901 = vadd.f32 %v811, %v900
        %v902 = vpop.f32.mrb[0].mxu0
        %v903 = vadd.f32 %v811, %v902
        %904 = vdwg.mxu0
        %v905 = vtanh.pop %v889
        %v906 = vtanh.pop %v891
        %v907 = vtanh.pop %v895
        %v908 = vtanh.pop %v897
        %v909 = vtanh.pop %v901
        %v910 = vtanh.pop %v903
        %v911 = vld [vmem:[%s10] sm:$0xff]
        %v912 = vld [vmem:[%s11] sm:$0xff]
        %914 = vset.pattern.permute.xlu0 0
        %915 = vperm.xlu0 %914, %v912
        %v916 = vpop.permute.xlu0 %915
        %v919 = vsel %vm574, %v911, 0
        %921 = vmatprep.subr.mxu0 %v906
        %922 = vmatpush1.msra.mxu0 %v905
        %923 = vmatprep.subr.mxu0 %v908
        %924 = vmatpush1.msra.mxu0 %v907
        %925 = vmatprep.subr.mxu0 %v910
        %926 = vmatpush1.msra.mxu0 %v909
        %927 = vmatprep.subr.mxu0 0.0
        %928 = vmatpush1.msra.mxu0 0.0
        %929 = vmatprep.subr.mxu0 0.0
        %930 = vmatpush1.msra.mxu0 0.0
        %931 = vmatprep.subr.mxu0 0.0
        %932 = vmatpush1.msra.mxu0 0.0
        %933 = vmatprep.subr.mxu0 0.0
        %934 = vmatpush1.msra.mxu0 0.0
        %935 = vmatprep.subr.mxu0 0.0
        %936 = vmatpush1.msra.mxu0 0.0
        %937 = vmatprep.subr.mxu0 0.0
        %938 = vmatpush1.msra.mxu0 0.0
        %939 = vmatprep.subr.mxu0 0.0
        %940 = vmatpush1.msra.mxu0 0.0
        %941 = vmatprep.subr.mxu0 0.0
        %942 = vmatpush1.msra.mxu0 0.0
        %943 = vmatprep.subr.mxu0 0.0
        %944 = vmatpush1.msra.mxu0 0.0
        %945 = vmatprep.subr.mxu0 0.0
        %946 = vmatpush1.msra.mxu0 0.0
        %947 = vmatprep.subr.mxu0 0.0
        %948 = vmatpush1.msra.mxu0 0.0
        %949 = vmatprep.subr.mxu0 0.0
        %950 = vmatpush1.msra.mxu0 0.0
        %951 = vmatprep.subr.mxu0 0.0
        %952 = vmatpush1.msra.mxu0 0.0
        %953 = vmatprep.subr.mxu0 0.0
        %954 = vmatpush1.msra.mxu0 0.0
        %955 = vmatprep.subr.mxu0 0.0
        %956 = vmatpush1.msra.mxu0 0.0
        %957 = vmatprep.subr.mxu0 0.0
        %958 = vmatpush1.msra.mxu0 0.0
        %959 = vmatprep.subr.mxu0 0.0
        %960 = vmatpush1.msra.mxu0 0.0
        %961 = vmatprep.subr.mxu0 0.0
        %962 = vmatpush1.msra.mxu0 0.0
        %963 = vmatprep.subr.mxu0 0.0
        %964 = vmatpush1.msra.mxu0 0.0
        %965 = vmatprep.subr.mxu0 0.0
        %966 = vmatpush1.msra.mxu0 0.0
        %967 = vmatprep.subr.mxu0 0.0
        %968 = vmatpush1.msra.mxu0 0.0
        %969 = vmatprep.subr.mxu0 0.0
        %970 = vmatpush1.msra.mxu0 0.0
        %971 = vmatprep.subr.mxu0 0.0
        %972 = vmatpush1.msra.mxu0 0.0
        %973 = vmatprep.subr.mxu0 0.0
        %974 = vmatpush1.msra.mxu0 0.0
        %975 = vmatprep.subr.mxu0 0.0
        %976 = vmatpush1.msra.mxu0 0.0
        %977 = vmatprep.subr.mxu0 0.0
        %978 = vmatpush1.msra.mxu0 0.0
        %979 = vmatprep.subr.mxu0 0.0
        %980 = vmatpush1.msra.mxu0 0.0
        %981 = vmatprep.subr.mxu0 0.0
        %982 = vmatpush1.msra.mxu0 0.0
        %983 = vmatprep.subr.mxu0 0.0
        %984 = vmatpush1.msra.mxu0 0.0
        %985 = vmatprep.mubr.f32.mxu0 0.0
        %986 = vmatmul.mubr.f32.gmra.mrb[0].mxu0 %v919
        %v987 = vpop.f32.mrb[0].mxu0
        %v988 = vadd.f32 %v916, %v987
        %v989 = vpop.f32.mrb[0].mxu0
        %v990 = vadd.f32 %v916, %v989
        %991 = vdwg.mxu0
        %v994 = vcombine.low %v988, %v990
        %v996 = vunpack.c.l.s4 1983009808
        %v997 = vunpack.c.0.s8 %v996
        %v998 = vlaneseq
        %v999 = vshrl.u32 %v998, 7
        %v1000 = vsub.s32 %v997, %v999
        %v1001 = vrot.slane %v994, %v1000
        %1003 = vst [vmem:[%s419] sm:$0xf] %v1001
        %s1004 = sand.u32 %s292, 1
        %s1005 = scalar_lea.sflag [#allocation3], %s1004
        %s1006 = sand.u32 %s292, 1
        %s1007 = smul.addr %s1006, 4
        %s1008 = scalar_lea.vmem [#allocation5], %s1007
        // Predicated region
        $region73: #{tpu_custom_call.1} parent=67 // pred_check
          %p1009 = pneg %p302
        $region74: #{tpu_custom_call.1} parent=67 // pred_check_branch
          %1011 = sbr.rel (%p1009) target = $region76
        $region75: #{tpu_custom_call.1} parent=67 // pred_region
          %s1012 = smul.u32 2, %s27
          %s1014 = ssub.s32 64, 64
          %1015 = vsyncadd %s1005, %s1014
          %s1016 = smul.addr %s1012, 32
          %s1017 = scalar_lea.hbm %s12, %s1016
          %s1019 = sshll.u32 %s1008, 4
          %s1020 = int_to_ptr.vmem [resolvable:$true] %s1019
          %1022 = dma.vmem_to_hbm [thread:$0]  %s1020, 64, %s1017, %s1005
        $region76: #{tpu_custom_call.1} parent=67 // pred_fallthru
          _
      $region68: #{tpu_custom_call.1} parent=5 // pred_fallthru
        _
      %p1023 = scmp.le.s32.totalorder 2, %s22
      // Predicated region
      $region77: #{tpu_custom_call.1} parent=5 // pred_check
        %p1024 = pneg %p1023
      $region78: #{tpu_custom_call.1} parent=5 // pred_check_branch
        %1026 = sbr.rel (%p1024) target = $region80
      $region79: #{tpu_custom_call.1} parent=5 // pred_region
        %s1027 = ssub.s32 %s22, 2
        // Predicated region
        $region81: #{tpu_custom_call.1} parent=79 // pred_check
          %p1028 = pneg %p308
        $region82: #{tpu_custom_call.1} parent=79 // pred_check_branch
          %1030 = sbr.rel (%p1028) target = $region84
        $region83: #{tpu_custom_call.1} parent=79 // pred_region
          %s1031 = sand.u32 %s293, 1
          %s1032 = scalar_lea.sflag [#allocation3], %s1031
          %s1033 = sand.u32 %s293, 1
          %s1034 = smul.addr %s1033, 4
          %s1035 = scalar_lea.vmem [#allocation5], %s1034
          %1036 = dma.done %s1032, 64
        $region84: #{tpu_custom_call.1} parent=79 // pred_fallthru
          _
      $region80: #{tpu_custom_call.1} parent=5 // pred_fallthru
        _
    $region6: #{tpu_custom_call.1} parent=1 // loop_footer
      %s26 = sadd.s32 1, %s22
    $region7: #{tpu_custom_call.1} parent=1 // loop_footer_branch
      %21 = sbr.rel target = $region3
    $region8: #{tpu_custom_call.1} parent=1 // loop_exit
      _
    %1037 = vsyncpa [#allocation3], 1
    %s1038 = scalar_lea.sflag [#allocation3], 1
    %1039 = vsyncpa %s1038, 1
    %1040 = vsyncpa [#allocation4], 1
    %s1041 = scalar_lea.sflag [#allocation4], 1
    %1042 = vsyncpa %s1041, 1

</llo_original>
